<compile_context>
chip_gen: v6e
topology: v6e:2x2x1
jax: 0.10.0
libtpu: 0.0.40
codegen_flags: <defaults>
</compile_context>

<pallas_src>
import functools

import jax
import jax.numpy as jnp
from jax import lax
from jax.experimental import pallas as pl
from jax.experimental.pallas import tpu as pltpu


_MAX_TILE_ROWS = 4096
_MAX_TILE_LANES = 2048


def _round_up(x, m):
    return ((x + m - 1) // m) * m


def _mse_partial_kernel(t_ref, s_ref, o_ref, acc_ref, *, m, v):
    """Accumulate sum((s - t)^2) for one row block into an (8,128) f32 vreg."""
    i = pl.program_id(0)
    j = pl.program_id(1)
    tm, tv = s_ref.shape          # block shape (static)
    n_chunks = tv // 128
    n_sub = tm // 8

    # Trace-time facts: does any block along this axis have a ragged tail?
    need_row = (m % tm) != 0
    need_col = (v % tv) != 0

    @pl.when(j == 0)
    def _init():
        acc_ref[...] = jnp.zeros_like(acc_ref)

    def _step(apply_mask):
        row_ok = None
        col_base = None
        if apply_mask and need_row:
            rid = lax.broadcasted_iota(jnp.int32, (tm, 128), 0) + i * tm
            row_ok = rid < m
        if apply_mask and need_col:
            col_base = lax.broadcasted_iota(jnp.int32, (tm, 128), 1) + j * tv

        run = None  # running (tm, 128) f32 partial; pure VPU adds
        for c in range(n_chunks):
            sl = slice(c * 128, (c + 1) * 128)
            d = (s_ref[:, sl].astype(jnp.float32)
                 - t_ref[:, sl].astype(jnp.float32))
            dd = d * d
            if apply_mask:
                ok = row_ok
                if need_col:
                    col_ok = (col_base + c * 128) < v
                    ok = col_ok if ok is None else (ok & col_ok)
                dd = jnp.where(ok, dd, 0.0)
            run = dd if run is None else run + dd

        # Sublane-group reduce (tm,128) -> (8,128): vreg-aligned slice adds.
        part = run[0:8, :]
        for r in range(1, n_sub):
            part = part + run[r * 8:(r + 1) * 8, :]
        acc_ref[...] += part

    if need_row or need_col:
        conds = []
        if need_row:
            conds.append(i == pl.num_programs(0) - 1)
        if need_col:
            conds.append(j == pl.num_programs(1) - 1)
        edge = conds[0]
        for extra in conds[1:]:
            edge = edge | extra
        pl.when(edge)(lambda: _step(True))
        pl.when(jnp.logical_not(edge))(lambda: _step(False))
    else:
        _step(False)

    @pl.when(j == pl.num_programs(1) - 1)
    def _finalize():
        o_ref[0] = acc_ref[...]      # lane-dense (8,128) partial for row block i


def logits_matching_loss(teacher_logits, student_logits, *, reduction="mean"):
    """Pallas equivalent of nn.MSELoss(reduction)(student_logits, teacher_logits)."""
    assert teacher_logits.shape == student_logits.shape
    assert reduction in ("mean", "sum")

    # Flatten to [M, V]; the logit axis maps to TPU lanes.
    v = teacher_logits.shape[-1]
    t2 = teacher_logits.reshape(-1, v)
    s2 = student_logits.reshape(-1, v)
    m = t2.shape[0]

    n_elems = m * v
    scale = (1.0 / n_elems) if reduction == "mean" else 1.0

    t_item = jnp.dtype(t2.dtype).itemsize
    s_item = jnp.dtype(s2.dtype).itemsize
    itemsize_min = min(t_item, s_item)
    itemsize_max = max(t_item, s_item)
    # Sublane alignment: 8 for f32, 16 for bf16/f16, 32 for 1-byte dtypes.
    sublane = max(8, 8 * (4 // itemsize_min))

    # Generation-aware VMEM budget (v5e/v6e: 128 MiB, v7x: 64 MiB).
    try:
        info = pltpu.get_tpu_info()
        vmem_cap = int(getattr(info, "vmem_capacity_bytes", 64 * 1024 * 1024))
    except Exception:
        vmem_cap = 64 * 1024 * 1024
    vmem_limit = int(min((3 * vmem_cap) // 4, 100 * 1024 * 1024))
    target_block_bytes = max(2 * 1024 * 1024, vmem_cap // 20)  # per-input block

    # Vocab (lane) tiling: prefer one full-vocab tile (contiguous-row DMA);
    # lane-chunk only vocabularies too large for the per-block budget.
    v_full = _round_up(v, 128)
    if v_full * sublane * itemsize_max <= target_block_bytes:
        tv = v_full
    else:
        n_vblk = pl.cdiv(v_full, _MAX_TILE_LANES)
        tv = _round_up(pl.cdiv(v_full, n_vblk), 128)

    # Row tiling: fill the per-input block budget, clamp to the array.
    rows_budget = max(sublane, target_block_bytes // (tv * itemsize_max))
    tm = max(sublane, (rows_budget // sublane) * sublane)
    tm = min(tm, _MAX_TILE_ROWS, _round_up(m, sublane))

    n_i = pl.cdiv(m, tm)
    n_j = pl.cdiv(v, tv)

    kernel = functools.partial(_mse_partial_kernel, m=m, v=v)

    partials = pl.pallas_call(
        kernel,
        out_shape=jax.ShapeDtypeStruct((n_i, 8, 128), jnp.float32),
        grid_spec=pltpu.PrefetchScalarGridSpec(
            num_scalar_prefetch=0,
            grid=(n_i, n_j),
            in_specs=[
                pl.BlockSpec((tm, tv), lambda i, j: (i, j)),
                pl.BlockSpec((tm, tv), lambda i, j: (i, j)),
            ],
            out_specs=pl.BlockSpec((1, 8, 128), lambda i, j: (i, 0, 0)),
            scratch_shapes=[pltpu.VMEM((8, 128), jnp.float32)],
        ),
        compiler_params=pltpu.CompilerParams(
            # Row blocks are independent (per-block init/finalize + own output),
            # so the row axis may be split across TensorCores; the vocab axis
            # is a sequential reduction.
            dimension_semantics=("parallel", "arbitrary"),
            vmem_limit_bytes=vmem_limit,
        ),
        cost_estimate=pl.CostEstimate(
            flops=3 * m * v,
            transcendentals=0,
            bytes_accessed=m * v * (t_item + s_item) + n_i * 8 * 128 * 4,
        ),
    )(t2, s2)

    # Tiny final reduction + reduction scale in the wrapper (f32).
    return jnp.sum(partials) * jnp.float32(scale)


if __name__ == "__main__":
    key = jax.random.PRNGKey(0)
    k_t, k_s = jax.random.split(key)

    # Small shapes: batch=2, seq=8, vocab=128 -> flattened [16, 128] in kernel.
    teacher = jax.random.normal(k_t, (2, 8, 128), dtype=jnp.float32)
    student = jax.random.normal(k_s, (2, 8, 128), dtype=jnp.float32)

    loss_mean = jax.block_until_ready(
        logits_matching_loss(teacher, student, reduction="mean"))
    loss_sum = jax.block_until_ready(
        logits_matching_loss(teacher, student, reduction="sum"))

    ref_mean = jnp.mean((student - teacher) ** 2)
    ref_sum = jnp.sum((student - teacher) ** 2)
    assert jnp.allclose(loss_mean, ref_mean, rtol=1e-5, atol=1e-5)
    assert jnp.allclose(loss_sum, ref_sum, rtol=1e-5, atol=1e-4)

    # Ragged shape exercising the in-kernel masking path (M=15 rows, V=200 lanes).
    t3 = jax.random.normal(k_t, (3, 5, 200), dtype=jnp.float32)
    s3 = jax.random.normal(k_s, (3, 5, 200), dtype=jnp.float32)
    lm3 = jax.block_until_ready(logits_matching_loss(t3, s3, reduction="mean"))
    assert jnp.allclose(lm3, jnp.mean((s3 - t3) ** 2), rtol=1e-5, atol=1e-5)
    ls3 = jax.block_until_ready(logits_matching_loss(t3, s3, reduction="sum"))
    assert jnp.allclose(ls3, jnp.sum((s3 - t3) ** 2), rtol=1e-5, atol=1e-3)

    # bf16 logits (halved HBM traffic; accumulation still in f32 in-kernel).
    tb = teacher.astype(jnp.bfloat16)
    sb = student.astype(jnp.bfloat16)
    lb = jax.block_until_ready(logits_matching_loss(tb, sb, reduction="mean"))
    ref_b = jnp.mean((sb.astype(jnp.float32) - tb.astype(jnp.float32)) ** 2)
    assert jnp.allclose(lb, ref_b, rtol=1e-3, atol=1e-3)

    print("KERNEL_OK")
</pallas_src>

<mosaic_0001>
module attributes {stable_mosaic.version = 11 : i64} {
  func.func @_mse_partial_kernel(%arg0: i32, %arg1: i32, %arg2: memref<16x128xf32, #tpu.memory_space<vmem>>, %arg3: memref<16x128xf32, #tpu.memory_space<vmem>>, %arg4: memref<1x8x128xf32, #tpu.memory_space<vmem>>, %arg5: memref<8x128xf32, #tpu.memory_space<vmem>>) attributes {dimension_semantics = [#tpu.dimension_semantics<parallel>, #tpu.dimension_semantics<arbitrary>], iteration_bounds = array<i64: 1, 1>, scalar_prefetch = 0 : i64, scratch_operands = 1 : i64, tpu.core_type = #tpu.core_type<tc>, window_params = [{transform_indices = @transform_0, window_bounds = array<i64: 16, 128>}, {transform_indices = @transform_1, window_bounds = array<i64: 16, 128>}, {transform_indices = @transform_2, window_bounds = array<i64: 1, 8, 128>}]} {
    %c0_i32 = arith.constant 0 : i32
    %0 = arith.cmpi eq, %arg1, %c0_i32 : i32
    %1 = arith.extui %0 : i1 to i32
    %c0_i32_0 = arith.constant 0 : i32
    %2 = arith.cmpi ne, %1, %c0_i32_0 : i32
    scf.if %2 {
      %cst = arith.constant 0.000000e+00 : f32
      %16 = vector.broadcast %cst : f32 to vector<8x128xf32>
      %c0_10 = arith.constant 0 : index
      %c0_11 = arith.constant 0 : index
      %17 = vector.load %arg5[%c0_10, %c0_11] : memref<8x128xf32, #tpu.memory_space<vmem>>, vector<8x128xf32>
      tpu.vector_store %arg5[%c0_10, %c0_11], %16 {strides = array<i32>} : memref<8x128xf32, #tpu.memory_space<vmem>>, vector<8x128xf32>,
    } else {
    }
    %c0 = arith.constant 0 : index
    %c0_1 = arith.constant 0 : index
    %3 = vector.load %arg3[%c0, %c0_1] : memref<16x128xf32, #tpu.memory_space<vmem>>, vector<16x128xf32>
    %c0_2 = arith.constant 0 : index
    %c0_3 = arith.constant 0 : index
    %4 = vector.load %arg2[%c0_2, %c0_3] : memref<16x128xf32, #tpu.memory_space<vmem>>, vector<16x128xf32>
    %5 = arith.subf %3, %4 : vector<16x128xf32>
    %6 = arith.mulf %5, %5 : vector<16x128xf32>
    %7 = vector.extract_strided_slice %6 {offsets = [0, 0], sizes = [8, 128], strides = [1, 1]} : vector<16x128xf32> to vector<8x128xf32>
    %8 = vector.extract_strided_slice %6 {offsets = [8, 0], sizes = [8, 128], strides = [1, 1]} : vector<16x128xf32> to vector<8x128xf32>
    %9 = arith.addf %7, %8 : vector<8x128xf32>
    %c0_4 = arith.constant 0 : index
    %c0_5 = arith.constant 0 : index
    %10 = vector.load %arg5[%c0_4, %c0_5] : memref<8x128xf32, #tpu.memory_space<vmem>>, vector<8x128xf32>
    %11 = arith.addf %10, %9 : vector<8x128xf32>
    %c0_6 = arith.constant 0 : index
    %c0_7 = arith.constant 0 : index
    %12 = vector.load %arg5[%c0_6, %c0_7] : memref<8x128xf32, #tpu.memory_space<vmem>>, vector<8x128xf32>
    tpu.vector_store %arg5[%c0_6, %c0_7], %11 {strides = array<i32>} : memref<8x128xf32, #tpu.memory_space<vmem>>, vector<8x128xf32>,
    %c0_i32_8 = arith.constant 0 : i32
    %13 = arith.cmpi eq, %arg1, %c0_i32_8 : i32
    %14 = arith.extui %13 : i1 to i32
    %c0_i32_9 = arith.constant 0 : i32
    %15 = arith.cmpi ne, %14, %c0_i32_9 : i32
    scf.if %15 {
      %c0_10 = arith.constant 0 : index
      %c0_11 = arith.constant 0 : index
      %16 = vector.load %arg5[%c0_10, %c0_11] : memref<8x128xf32, #tpu.memory_space<vmem>>, vector<8x128xf32>
      %c0_12 = arith.constant 0 : index
      %c0_13 = arith.constant 0 : index
      %c0_14 = arith.constant 0 : index
      %17 = vector.load %arg4[%c0_12, %c0_13, %c0_14] : memref<1x8x128xf32, #tpu.memory_space<vmem>>, vector<1x8x128xf32>
      %18 = vector.shape_cast %17 : vector<1x8x128xf32> to vector<8x128xf32>
      %19 = vector.shape_cast %16 : vector<8x128xf32> to vector<1x8x128xf32>
      tpu.vector_store %arg4[%c0_12, %c0_13, %c0_14], %19 {strides = array<i32>} : memref<1x8x128xf32, #tpu.memory_space<vmem>>, vector<1x8x128xf32>,
    } else {
    }
    return
  }
  func.func @transform_0(%arg0: i32, %arg1: i32) -> (i32, i32) {
    %c0_i32 = arith.constant 0 : i32
    return %arg0, %arg1 : i32, i32
  }
  func.func @transform_1(%arg0: i32, %arg1: i32) -> (i32, i32) {
    %c0_i32 = arith.constant 0 : i32
    return %arg0, %arg1 : i32, i32
  }
  func.func @transform_2(%arg0: i32, %arg1: i32) -> (i32, i32, i32) {
    %c0_i32 = arith.constant 0 : i32
    %c0_i32_0 = arith.constant 0 : i32
    %c0_i32_1 = arith.constant 0 : i32
    return %arg0, %c0_i32, %c0_i32_0 : i32, i32, i32
  }
}

</mosaic_0001>

<llo_original>
// kernel: tpu_custom_call.1
$region0: #{tpu_custom_call.1}
  #allocation0 [shape = 'u32[]', space=smem, size = 0x4, offset = 0x4, fixed_abs, tag = 'smem constant byte address 0x4 - core index']
  #allocation1 [shape = 'u32[144,128]{1,0:T(1,128)}', space=vmem, size = 0x12000, scoped, tag = 'internal scratch']
  #allocation2 [shape = 'f32[8,128]{1,0:T(8,128)}', space=vmem, size = 0x1000, scoped, tag = 'scratch operand']
  %s0 = inlined_call_operand.hbm [shape: f32[16,128], index: 0, kind: input, shape index: {}]
  %s1 = inlined_call_operand.hbm [shape: f32[16,128], index: 1, kind: input, shape index: {}]
  %s2 = inlined_call_operand.hbm [shape: f32[1,8,128], index: 2, kind: output, shape index: {}]
  %s3 = sld [smem:[#allocation0]]
  $region34: #{tpu_custom_call.1} parent=0
    _
  %s5 = ssub.s32 1, %s3
  %s6 = scalar_select 0, %s5, %s3
  $region1: #{tpu_custom_call.1} parent=0
    #allocation3 [shape = 'u8[8192]{0}', space=vmem, size = 0x2000, scoped, tag = 'input window, operand 0, single buffered']
    #allocation4 [shape = 's32[1]{0}', space=sflag, size = 0x4, scoped, tag = 'scoped memory for tpu_custom_call.1']
    #allocation5 [shape = 's32[1]{0}', space=sflag, size = 0x4, scoped, tag = 'scoped memory for tpu_custom_call.1']
    #allocation6 [shape = 'u8[8192]{0}', space=vmem, size = 0x2000, scoped, tag = 'input window, operand 1, single buffered']
    #allocation7 [shape = 's32[1]{0}', space=sflag, size = 0x4, scoped, tag = 'scoped memory for tpu_custom_call.1']
    #allocation8 [shape = 'u8[4096]{0}', space=vmem, size = 0x1000, scoped, tag = 'output window, operand 0, single buffered']
    %7 = vsyncpa [#allocation4], 0
    %8 = vsyncpa [#allocation7], 0
    %9 = vsyncpa [#allocation5], 0
    // Predicated region
    $region2: #{tpu_custom_call.1} parent=1 // pred_check
      _
    $region3: #{tpu_custom_call.1} parent=1 // pred_check_branch
      %11 = sbr.rel (0) target = $region5
    $region4: #{tpu_custom_call.1} parent=1 // pred_region
      %s13 = ssub.s32 256, 256
      %14 = vsyncadd [#allocation4], %s13
      %s15 = sshll.u32 [#allocation3], 4
      %s16 = int_to_ptr.vmem [resolvable:$true] %s15
      %21 = dma.hbm_to_vmem [thread:$0]  %s0, 256, %s16, [#allocation4], 128, 128, 8
    $region5: #{tpu_custom_call.1} parent=1 // pred_fallthru
      _
    // Predicated region
    $region6: #{tpu_custom_call.1} parent=1 // pred_check
      _
    $region7: #{tpu_custom_call.1} parent=1 // pred_check_branch
      %23 = sbr.rel (0) target = $region9
    $region8: #{tpu_custom_call.1} parent=1 // pred_region
      %s25 = ssub.s32 256, 256
      %26 = vsyncadd [#allocation7], %s25
      %s27 = sshll.u32 [#allocation6], 4
      %s28 = int_to_ptr.vmem [resolvable:$true] %s27
      %33 = dma.hbm_to_vmem [thread:$0]  %s1, 256, %s28, [#allocation7], 128, 128, 8
    $region9: #{tpu_custom_call.1} parent=1 // pred_fallthru
      _
    // Predicated region
    $region10: #{tpu_custom_call.1} parent=1 // pred_check
      _
    $region11: #{tpu_custom_call.1} parent=1 // pred_check_branch
      %35 = sbr.rel (0) target = $region13
    $region12: #{tpu_custom_call.1} parent=1 // pred_region
      %36 = dma.done [#allocation4], 256
    $region13: #{tpu_custom_call.1} parent=1 // pred_fallthru
      _
    // Predicated region
    $region14: #{tpu_custom_call.1} parent=1 // pred_check
      _
    $region15: #{tpu_custom_call.1} parent=1 // pred_check_branch
      %38 = sbr.rel (0) target = $region17
    $region16: #{tpu_custom_call.1} parent=1 // pred_region
      %39 = dma.done [#allocation7], 256
    $region17: #{tpu_custom_call.1} parent=1 // pred_fallthru
      _
    %p40 = scmp.eq.s32.totalorder 0, 0
    // Predicated region
    $region18: #{tpu_custom_call.1} parent=1 // pred_check
      %p41 = pneg %p40
    $region19: #{tpu_custom_call.1} parent=1 // pred_check_branch
      %43 = sbr.rel (%p41) target = $region21
    $region20: #{tpu_custom_call.1} parent=1 // pred_region
      %44 = vst [vmem:[#allocation2] sm:$0xff] 0.0
    $region21: #{tpu_custom_call.1} parent=1 // pred_fallthru
      _
    %v45 = vld [vmem:[#allocation6] sm:$0xff]
    %v46 = vld [vmem:[#allocation6 + $0x8] sm:$0xff]
    %v47 = vld [vmem:[#allocation3] sm:$0xff]
    %v48 = vld [vmem:[#allocation3 + $0x8] sm:$0xff]
    %v49 = vsub.f32 %v45, %v47
    %v50 = vsub.f32 %v46, %v48
    %v51 = vmul.f32 %v49, %v49
    %v52 = vmul.f32 %v50, %v50
    %v53 = vadd.f32 %v51, %v52
    %v54 = vld [vmem:[#allocation2] sm:$0xff]
    %v55 = vadd.f32 %v54, %v53
    %56 = vst [vmem:[#allocation2] sm:$0xff] %v55
    // Predicated region
    $region22: #{tpu_custom_call.1} parent=1 // pred_check
      %p57 = pneg %p40
    $region23: #{tpu_custom_call.1} parent=1 // pred_check_branch
      %59 = sbr.rel (%p57) target = $region25
    $region24: #{tpu_custom_call.1} parent=1 // pred_region
      %v60 = vld [vmem:[#allocation2] sm:$0xff]
      %61 = vst [vmem:[#allocation8] sm:$0xff] %v60
    $region25: #{tpu_custom_call.1} parent=1 // pred_fallthru
      _
    // Predicated region
    $region26: #{tpu_custom_call.1} parent=1 // pred_check
      _
    $region27: #{tpu_custom_call.1} parent=1 // pred_check_branch
      %63 = sbr.rel (0) target = $region29
    $region28: #{tpu_custom_call.1} parent=1 // pred_region
      %s65 = ssub.s32 128, 128
      %66 = vsyncadd [#allocation5], %s65
      %s68 = sshll.u32 [#allocation8], 4
      %s69 = int_to_ptr.vmem [resolvable:$true] %s68
      %71 = dma.vmem_to_hbm [thread:$0]  %s69, 128, %s2, [#allocation5]
    $region29: #{tpu_custom_call.1} parent=1 // pred_fallthru
      _
    // Predicated region
    $region30: #{tpu_custom_call.1} parent=1 // pred_check
      _
    $region31: #{tpu_custom_call.1} parent=1 // pred_check_branch
      %73 = sbr.rel (0) target = $region33
    $region32: #{tpu_custom_call.1} parent=1 // pred_region
      %74 = dma.done [#allocation5], 128
    $region33: #{tpu_custom_call.1} parent=1 // pred_fallthru
      _
    %75 = vsyncpa [#allocation4], 1
    %76 = vsyncpa [#allocation7], 1
    %77 = vsyncpa [#allocation5], 1

</llo_original>
